<compile_context>
chip_gen: v7x
topology: tpu7x:2x2x1
jax: 0.10.0
libtpu: 0.0.40
codegen_flags: <defaults>
</compile_context>

<pallas_src>
import math
import typing as tp

import jax
import jax.numpy as jnp
from jax.experimental import pallas as pl
from jax.experimental.pallas import tpu as pltpu


def _round_up(n: int, m: int) -> int:
    return ((n + m - 1) // m) * m


def _pad_to(a, shape):
    pads = [(0, s - d) for d, s in zip(a.shape, shape)]
    if all(p == (0, 0) for p in pads):
        return a
    return jnp.pad(a, pads)


# ---------------------------------------------------------------------------
# Pallas kernel: fused conditioned diffusion forward for one (batch, T-tile).
# ---------------------------------------------------------------------------
def _dit_kernel(
    xc_ref,     # [1, TILE_T, C_tot_pad] bf16  concat(x, input_concat, control), channels-last
    cond_ref,   # [1, 1, D_pad]          f32   b_in + b_ctrl + timestep-MLP + global-cond
    kt_ref,     # [1, D_pad, S_pad]      bf16  pre-transposed K with scaled w_q folded in
    vt_ref,     # [1, S_pad, D_pad]      bf16  V with w_o folded in
    mb_ref,     # [1, 1, S_pad]          f32   additive attention-mask bias
    w_in_ref,   # [C_tot_pad, D_pad]     bf16  fused input/concat/control 1x1-conv weight
    w_out_ref,  # [D_pad, C_out_pad]     bf16  output head
    b_out_ref,  # [1, C_out_pad]         f32
    o_ref,      # [1, C_out_pad, TILE_T] f32   channels-first writeback
):
    f32 = jnp.float32
    bf16 = jnp.bfloat16

    xc = xc_ref[0]          # [TILE_T, C_tot_pad]
    kt = kt_ref[0]          # [D_pad, S_pad]
    vt = vt_ref[0]          # [S_pad, D_pad]
    mask_bias = mb_ref[0]   # [1, S_pad]

    # Fused input projection (1x1 conv over concatenated channels) + conditioning bias.
    h = jnp.dot(xc, w_in_ref[...], preferred_element_type=f32) + cond_ref[0]   # [TILE_T, D_pad]

    # Masked cross-attention; w_q (scaled) folded into kt, w_o folded into vt.
    scores = jnp.dot(h.astype(bf16), kt, preferred_element_type=f32) + mask_bias  # [TILE_T, S_pad]
    m = jnp.max(scores, axis=-1, keepdims=True)
    p = jnp.exp(scores - m)
    p = p / jnp.sum(p, axis=-1, keepdims=True)          # exact division (PyTorch parity)
    h = h + jnp.dot(p.astype(bf16), vt, preferred_element_type=f32)              # [TILE_T, D_pad]

    # Output head (1x1 conv), small-channel output stored channels-first.
    out = jnp.dot(h.astype(bf16), w_out_ref[...], preferred_element_type=f32) + b_out_ref[...]
    o_ref[0] = out.T.astype(o_ref.dtype)                # [C_out_pad, TILE_T]


_WEIGHT_NAMES = ("w_in", "w_out", "b_out")


def run_dit_pallas(kernel_params, xc, cond_bias, kt, vt, mask_bias, *, tile_t):
    B, T_pad, C_tot_pad = xc.shape
    D_pad, S_pad = kt.shape[1], kt.shape[2]
    C_out_pad = kernel_params["w_out"].shape[1]
    n_t = T_pad // tile_t

    data_inputs = (xc, cond_bias, kt, vt, mask_bias)
    data_specs = [
        pl.BlockSpec((1, tile_t, C_tot_pad), lambda b, tt: (b, tt, 0)),
        pl.BlockSpec((1, 1, D_pad),          lambda b, tt: (b, 0, 0)),
        pl.BlockSpec((1, D_pad, S_pad),      lambda b, tt: (b, 0, 0)),
        pl.BlockSpec((1, S_pad, D_pad),      lambda b, tt: (b, 0, 0)),
        pl.BlockSpec((1, 1, S_pad),          lambda b, tt: (b, 0, 0)),
    ]
    weights = tuple(kernel_params[n] for n in _WEIGHT_NAMES)
    # Grid-invariant weights: whole-array VMEM residency (single copy, no pipelining).
    weight_specs = [pl.BlockSpec(memory_space=pltpu.MemorySpace.VMEM) for _ in weights]

    out_spec = pl.BlockSpec((1, C_out_pad, tile_t), lambda b, tt: (b, 0, tt))
    out_shape = jax.ShapeDtypeStruct((B, C_out_pad, T_pad), jnp.float32)

    # VMEM budget: double-buffered streamed operands + single-copy weights +
    # f32 in-kernel temporaries (h / scores / p / attn), capped below physical VMEM.
    need = (
        2 * tile_t * C_tot_pad * xc.dtype.itemsize            # xc (double-buffered)
        + 2 * D_pad * cond_bias.dtype.itemsize                 # cond
        + 2 * D_pad * S_pad * kt.dtype.itemsize                # kt
        + 2 * S_pad * D_pad * vt.dtype.itemsize                # vt
        + 2 * S_pad * mask_bias.dtype.itemsize                 # mask bias
        + 2 * C_out_pad * tile_t * 4                           # output (double-buffered)
        + sum(int(w.size) * w.dtype.itemsize for w in weights) # weights, single copy
        + 4 * tile_t * D_pad * 4                               # f32 h / residual / casts
        + 2 * tile_t * S_pad * 4                               # f32 scores / p
    )
    try:
        info = pltpu.get_tpu_info()
        phys_vmem = int(getattr(info, "vmem_capacity_bytes", 64 * 2**20))
    except Exception:
        phys_vmem = 64 * 2**20                                 # conservative (v7x per-TC)
    vmem_limit = int(min(int(0.75 * phys_vmem), max(32 * 2**20, need + 8 * 2**20)))

    # NOTE(v7x megacore): with B > 1 or n_t > 1 the parallel grid axes shard
    # across both TensorCores; for B == 1 keep n_t even when possible.
    compiler_params = pltpu.CompilerParams(
        dimension_semantics=("parallel", "parallel"),
        vmem_limit_bytes=vmem_limit,
    )

    return pl.pallas_call(
        _dit_kernel,
        out_shape=out_shape,
        grid=(B, n_t),
        in_specs=data_specs + weight_specs,
        out_specs=out_spec,
        compiler_params=compiler_params,
    )(*data_inputs, *weights)


# ---------------------------------------------------------------------------
# Concrete conditioned diffusion model (Pallas-backed).
# ---------------------------------------------------------------------------
class AVClipControlledConditionedDiffusionModel:
    """Concrete stand-in for the abstract PyTorch base class."""

    def __init__(self, params, d_model,
                 supports_cross_attention=True, supports_input_concat=True,
                 supports_global_cond=True, supports_prepend_cond=False):
        self.params = params
        self.d_model = d_model
        self.supports_cross_attention = supports_cross_attention
        self.supports_input_concat = supports_input_concat
        self.supports_global_cond = supports_global_cond
        self.supports_prepend_cond = supports_prepend_cond
        (self._kernel_params,
         self._precompute,
         self._dims) = self._prepare_kernel_params(params, d_model)

    @staticmethod
    def _prepare_kernel_params(params, d_model):
        """Fuse / fold / pad / cast weights once for the Pallas kernel."""
        f32, bf16 = jnp.float32, jnp.bfloat16
        c_io = params["w_in_x"].shape[0]
        c_cc = params["w_in_c"].shape[0]
        c_ctrl = params["w_ctrl"].shape[0]
        d = d_model
        c_tot = c_io + c_cc + c_ctrl
        c_tot_pad = _round_up(c_tot, 16)                      # bf16 sublane granule
        d_pad = 128 if d <= 128 else _round_up(d, 256)        # full MXU width on v6e/v7x
        c_out_pad = _round_up(c_io, 8)                        # channels-first output (sublane axis)

        # Fused channel projection: concat(x, input_concat_cond, control_signal) @ w_in.
        w_in = jnp.concatenate(
            [params["w_in_x"], params["w_in_c"], params["w_ctrl"]], axis=0)   # [c_tot, d]

        kp = {
            "w_in":  _pad_to(w_in, (c_tot_pad, d_pad)).astype(bf16),
            "w_out": _pad_to(params["w_out"], (d_pad, c_out_pad)).astype(bf16),
            "b_out": _pad_to(params["b_out"], (1, c_out_pad)).astype(f32),
        }
        # Algebraic folds for the per-batch precompute (done outside the kernel):
        #   scores = h @ (w_q_s @ w_k.T) @ ca.T       -> kt = w_kq @ ca.T   [D, S]
        #   attn_out @ w_o = p @ (ca @ (w_v @ w_o))   -> vt = ca @ w_vo     [S, D]
        scale = 1.0 / jnp.sqrt(jnp.float32(d))
        pre = {
            "w_kq": (params["w_q"] * scale) @ params["w_k"].T,    # [d, d_c]
            "w_vo": params["w_v"] @ params["w_o"],                # [d_c, d]
            "b_in_ctrl": params["b_in"] + params["b_ctrl"],       # [1, d]
        }
        dims = dict(c_io=c_io, c_cc=c_cc, c_ctrl=c_ctrl, c_tot=c_tot,
                    c_tot_pad=c_tot_pad, d=d, d_pad=d_pad, c_out_pad=c_out_pad)
        return kp, pre, dims

    def _fourier(self, t):
        d = self.d_model
        half = d // 2
        freqs = jnp.exp(jnp.linspace(0.0, jnp.log(1000.0), half)).astype(jnp.float32)
        ang = t.astype(jnp.float32)[:, None] * freqs[None, :]          # [B, D/2]
        return jnp.concatenate([jnp.cos(ang), jnp.sin(ang)], axis=-1)  # [B, D]

    def __call__(self, x, t, cross_attn_cond=None, cross_attn_mask=None,
                 input_concat_cond=None, global_cond=None, global_embed=None,
                 prepend_cond=None, prepend_cond_mask=None, control_signal=None,
                 cfg_scale: float = 1.0, cfg_dropout_prob: float = 0.0,
                 batch_cfg: bool = False, rescale_cfg: bool = False, **kwargs):
        # TODO(synk): CFG (cfg_scale != 1.0 / cfg_dropout_prob > 0) and prepend_cond are
        # model-specific in stable_audio_tools; the defaults (1.0 / 0.0 / None) are identity here.
        if global_cond is None:
            global_cond = global_embed

        p = self.params
        pre = self._precompute
        dims = self._dims
        f32, bf16 = jnp.float32, jnp.bfloat16

        B, C_io, T = x.shape
        S = cross_attn_cond.shape[1]
        d_pad = dims["d_pad"]

        # Large tiles amortize per-step pipeline overhead (v5e/v6e); kept modest
        # when D is very wide so f32 intermediates stay within v7x's 64 MiB VMEM.
        tile_t = 512 if T >= 512 else _round_up(T, 16)
        if d_pad >= 2048:
            tile_t = min(tile_t, 256)
        t_pad = _round_up(T, tile_t)
        s_pad = _round_up(S, 16)

        # ---- conditioning precompute in plain JAX (tiny M matmuls, batched over B) ----
        tf = self._fourier(t)                                               # [B, D]
        t_h = tf @ p["w_t1"] + p["b_t1"]
        t_h = t_h * jax.nn.sigmoid(t_h)                                     # SiLU
        temb = t_h @ p["w_t2"] + p["b_t2"]
        gemb = global_cond.astype(f32) @ p["w_g"] + p["b_g"]
        cond_bias = temb + gemb + pre["b_in_ctrl"]                          # [B, D]
        cond_bias = _pad_to(cond_bias, (B, d_pad))[:, None, :].astype(f32)  # [B, 1, D_pad]

        # K (pre-transposed, scaled w_q folded) and V (w_o folded), hoisted out of the kernel.
        ca = cross_attn_cond.astype(f32)
        kt = jnp.einsum("dc,bsc->bds", pre["w_kq"], ca)                     # [B, D, S]
        kt = _pad_to(kt, (B, d_pad, s_pad)).astype(bf16)
        vt = jnp.einsum("bsc,cd->bsd", ca, pre["w_vo"])                     # [B, S, D]
        vt = _pad_to(vt, (B, s_pad, d_pad)).astype(bf16)

        # Additive attention-mask bias (padded keys fully masked).
        mask_bias = jnp.full((B, s_pad), -1e9, f32)
        mask_bias = mask_bias.at[:, :S].set((cross_attn_mask.astype(f32) - 1.0) * 1e9)
        mask_bias = mask_bias[:, None, :]                                   # [B, 1, S_pad]

        # Fused channels-last streamed input: concat(x, input_concat, control), bf16 early.
        xc = jnp.concatenate([x.astype(bf16), input_concat_cond.astype(bf16),
                              control_signal.astype(bf16)], axis=1)         # [B, C_tot, T]
        xc = jnp.transpose(xc, (0, 2, 1))                                   # [B, T, C_tot]
        xc = _pad_to(xc, (B, t_pad, dims["c_tot_pad"]))

        out = run_dit_pallas(self._kernel_params, xc, cond_bias, kt, vt,
                             mask_bias, tile_t=tile_t)   # [B, C_out_pad, T_pad] (channels-first)
        return out[:, :C_io, :T]                                            # [B, C_io, T]


# ---------------------------------------------------------------------------
# Wrapper: faithful port of the PyTorch conditioning-assembly logic.
# ---------------------------------------------------------------------------
class AVClipControlledConditionedDiffusionModelWrapper:
    def __init__(self, model, conditioner, io_channels, sample_rate, min_input_length,
                 diffusion_objective: tp.Literal['v', 'rectified_flow'] = 'v',
                 pretransform=None,
                 cross_attn_cond_ids: tp.List[str] = [],
                 global_cond_ids: tp.List[str] = [],
                 input_concat_ids: tp.List[str] = [],
                 prepend_cond_ids: tp.List[str] = [],
                 control_ids: tp.List[str] = []):
        self.model = model
        self.conditioner = conditioner
        self.io_channels = io_channels
        self.sample_rate = sample_rate
        self.diffusion_objective = diffusion_objective
        self.pretransform = pretransform
        self.cross_attn_cond_ids = cross_attn_cond_ids
        self.global_cond_ids = global_cond_ids
        self.input_concat_ids = input_concat_ids
        self.prepend_cond_ids = prepend_cond_ids
        self.control_ids = control_ids
        self.min_input_length = min_input_length

    def get_conditioning_inputs(self, conditioning_tensors, negative=False):
        cross_attention_input = None
        cross_attention_masks = None
        global_cond = None
        input_concat_cond = None
        prepend_cond = None
        prepend_cond_mask = None
        control_signal = None

        if len(self.cross_attn_cond_ids) > 0:
            cross_attention_input = []
            cross_attention_masks = []
            for key in self.cross_attn_cond_ids:
                cross_attn_in, cross_attn_mask = conditioning_tensors[key]
                if len(cross_attn_in.shape) == 2:
                    cross_attn_in = jnp.expand_dims(cross_attn_in, 1)
                    cross_attn_mask = jnp.expand_dims(cross_attn_mask, 1)
                cross_attention_input.append(cross_attn_in)
                cross_attention_masks.append(cross_attn_mask)
            cross_attention_input = jnp.concatenate(cross_attention_input, axis=1)
            cross_attention_masks = jnp.concatenate(cross_attention_masks, axis=1)

        if len(self.global_cond_ids) > 0:
            global_conds = []
            for key in self.global_cond_ids:
                global_cond_input = conditioning_tensors[key][0]
                global_conds.append(global_cond_input)
            global_cond = jnp.concatenate(global_conds, axis=-1)
            if len(global_cond.shape) == 3:
                global_cond = jnp.squeeze(global_cond, axis=1)

        if len(self.input_concat_ids) > 0:
            input_concat_cond = jnp.concatenate(
                [conditioning_tensors[key][0] for key in self.input_concat_ids], axis=1)

        if len(self.prepend_cond_ids) > 0:
            prepend_conds = []
            prepend_cond_masks = []
            for key in self.prepend_cond_ids:
                prepend_cond_input, pcm = conditioning_tensors[key]
                prepend_conds.append(prepend_cond_input)
                prepend_cond_masks.append(pcm)
            prepend_cond = jnp.concatenate(prepend_conds, axis=1)
            prepend_cond_mask = jnp.concatenate(prepend_cond_masks, axis=1)

        if len(self.control_ids) > 0:
            # NOTE: mirrors the PyTorch reference exactly — the loop overwrites, so only
            # the last control_id's tensor list is concatenated.
            control_signal = []
            for key in self.control_ids:
                control_signal_input = conditioning_tensors[key]
            control_signal = jnp.concatenate(control_signal_input, axis=0)

        if negative:
            return {'negative_cross_attn_cond': cross_attention_input,
                    'negative_cross_attn_mask': cross_attention_masks,
                    'negative_global_cond': global_cond,
                    'negative_input_concat_cond': input_concat_cond}
        else:
            return {'cross_attn_cond': cross_attention_input,
                    'cross_attn_mask': cross_attention_masks,
                    'global_cond': global_cond,
                    'input_concat_cond': input_concat_cond,
                    'prepend_cond': prepend_cond,
                    'prepend_cond_mask': prepend_cond_mask,
                    'control_signal': control_signal}

    def forward(self, x, t, cond, **kwargs):
        return self.model(x, t, **self.get_conditioning_inputs(cond), **kwargs)

    __call__ = forward


# ---------------------------------------------------------------------------
# Deterministic parameter init + demo.
# ---------------------------------------------------------------------------
def init_params(key, c_io, c_cc, c_ctrl, d_c, d_g, d):
    ks = jax.random.split(key, 17)
    def w(k, shape, scale=0.1):
        return (scale * jax.random.normal(k, shape)).astype(jnp.float32)
    return {
        "w_in_x": w(ks[0], (c_io, d)),
        "w_in_c": w(ks[1], (c_cc, d)),
        "b_in":   w(ks[2], (1, d), 0.01),
        "w_t1":   w(ks[3], (d, d)),
        "b_t1":   w(ks[4], (1, d), 0.01),
        "w_t2":   w(ks[5], (d, d)),
        "b_t2":   w(ks[6], (1, d), 0.01),
        "w_g":    w(ks[7], (d_g, d)),
        "b_g":    w(ks[8], (1, d), 0.01),
        "w_ctrl": w(ks[9], (c_ctrl, d)),
        "b_ctrl": w(ks[10], (1, d), 0.01),
        "w_q":    w(ks[11], (d, d)),
        "w_k":    w(ks[12], (d_c, d)),
        "w_v":    w(ks[13], (d_c, d)),
        "w_o":    w(ks[14], (d, d)),
        "w_out":  w(ks[15], (d, c_io)),
        "b_out":  w(ks[16], (1, c_io), 0.01),
    }


if __name__ == "__main__":
    B, C_IO, T = 2, 4, 16          # audio latent [B, C, T] (PyTorch NCT)
    C_CC, C_CTRL = 4, 4            # input-concat / control channels
    S, D_C = 8, 32                 # cross-attn seq / dim
    D_G, D = 32, 32                # global-cond dim / model width

    key = jax.random.PRNGKey(0)
    k_in = jax.random.split(key, 8)

    x = jax.random.normal(k_in[0], (B, C_IO, T), jnp.float32)
    t = jax.random.uniform(k_in[1], (B,), jnp.float32)

    cross_attn = jax.random.normal(k_in[2], (B, S, D_C), jnp.float32)
    cross_mask = jnp.ones((B, S), jnp.float32)
    global_feat = jax.random.normal(k_in[3], (B, D_G), jnp.float32)
    concat_feat = jax.random.normal(k_in[4], (B, C_CC, T), jnp.float32)
    # control conditioning value is a list of tensors, concatenated along dim 0
    control_parts = [jax.random.normal(k_in[5], (1, C_CTRL, T), jnp.float32),
                     jax.random.normal(k_in[6], (1, C_CTRL, T), jnp.float32)]

    cond = {
        "video_clip":  (cross_attn, cross_mask),
        "global_feat": (global_feat, jnp.ones((B, 1), jnp.float32)),
        "concat_feat": (concat_feat, jnp.ones((B, 1), jnp.float32)),
        "av_control":  control_parts,
    }

    params = init_params(jax.random.PRNGKey(42), C_IO, C_CC, C_CTRL, D_C, D_G, D)
    inner_model = AVClipControlledConditionedDiffusionModel(params, d_model=D)

    wrapper = AVClipControlledConditionedDiffusionModelWrapper(
        model=inner_model,
        conditioner=None,              # MultiConditioner not needed for forward()
        io_channels=C_IO,
        sample_rate=16000,
        min_input_length=T,
        diffusion_objective="v",
        cross_attn_cond_ids=["video_clip"],
        global_cond_ids=["global_feat"],
        input_concat_ids=["concat_feat"],
        prepend_cond_ids=[],
        control_ids=["av_control"],
    )

    out = wrapper(x, t, cond)
    out = jax.block_until_ready(out)
    assert out.shape == (B, C_IO, T), out.shape
    assert jnp.all(jnp.isfinite(out))
    print("KERNEL_OK")
</pallas_src>

<mosaic_0001>
module attributes {stable_mosaic.version = 11 : i64} {
  func.func @_dit_kernel(%arg0: i32, %arg1: i32, %arg2: memref<1x16x16xbf16, #tpu.memory_space<vmem>>, %arg3: memref<1x1x128xf32, #tpu.memory_space<vmem>>, %arg4: memref<1x128x16xbf16, #tpu.memory_space<vmem>>, %arg5: memref<1x16x128xbf16, #tpu.memory_space<vmem>>, %arg6: memref<1x1x16xf32, #tpu.memory_space<vmem>>, %arg7: memref<16x128xbf16, #tpu.memory_space<vmem>>, %arg8: memref<128x8xbf16, #tpu.memory_space<vmem>>, %arg9: memref<1x8xf32, #tpu.memory_space<vmem>>, %arg10: memref<1x8x16xf32, #tpu.memory_space<vmem>>) attributes {dimension_semantics = [#tpu.dimension_semantics<parallel>, #tpu.dimension_semantics<parallel>], iteration_bounds = array<i64: 2, 1>, scalar_prefetch = 0 : i64, scratch_operands = 0 : i64, tpu.core_type = #tpu.core_type<tc>, window_params = [{transform_indices = @transform_0, window_bounds = array<i64: 1, 16, 16>}, {transform_indices = @transform_1, window_bounds = array<i64: 1, 1, 128>}, {transform_indices = @transform_2, window_bounds = array<i64: 1, 128, 16>}, {transform_indices = @transform_3, window_bounds = array<i64: 1, 16, 128>}, {transform_indices = @transform_4, window_bounds = array<i64: 1, 1, 16>}, {pipeline_mode = #tpu.pipeline_mode<synchronous>, transform_indices = @transform_5, window_bounds = array<i64: 16, 128>}, {pipeline_mode = #tpu.pipeline_mode<synchronous>, transform_indices = @transform_6, window_bounds = array<i64: 128, 8>}, {pipeline_mode = #tpu.pipeline_mode<synchronous>, transform_indices = @transform_7, window_bounds = array<i64: 1, 8>}, {transform_indices = @transform_8, window_bounds = array<i64: 1, 8, 16>}]} {
    %c0 = arith.constant 0 : index
    %c0_0 = arith.constant 0 : index
    %c0_1 = arith.constant 0 : index
    %0 = vector.load %arg2[%c0, %c0_0, %c0_1] : memref<1x16x16xbf16, #tpu.memory_space<vmem>>, vector<1x16x16xbf16>
    %1 = vector.shape_cast %0 : vector<1x16x16xbf16> to vector<16x16xbf16>
    %c0_2 = arith.constant 0 : index
    %c0_3 = arith.constant 0 : index
    %c0_4 = arith.constant 0 : index
    %2 = vector.load %arg4[%c0_2, %c0_3, %c0_4] : memref<1x128x16xbf16, #tpu.memory_space<vmem>>, vector<1x128x16xbf16>
    %3 = vector.shape_cast %2 : vector<1x128x16xbf16> to vector<128x16xbf16>
    %c0_5 = arith.constant 0 : index
    %c0_6 = arith.constant 0 : index
    %c0_7 = arith.constant 0 : index
    %4 = vector.load %arg5[%c0_5, %c0_6, %c0_7] : memref<1x16x128xbf16, #tpu.memory_space<vmem>>, vector<1x16x128xbf16>
    %5 = vector.shape_cast %4 : vector<1x16x128xbf16> to vector<16x128xbf16>
    %c0_8 = arith.constant 0 : index
    %c0_9 = arith.constant 0 : index
    %c0_10 = arith.constant 0 : index
    %6 = vector.load %arg6[%c0_8, %c0_9, %c0_10] : memref<1x1x16xf32, #tpu.memory_space<vmem>>, vector<1x1x16xf32>
    %7 = vector.shape_cast %6 : vector<1x1x16xf32> to vector<1x16xf32>
    %c0_11 = arith.constant 0 : index
    %c0_12 = arith.constant 0 : index
    %8 = vector.load %arg7[%c0_11, %c0_12] : memref<16x128xbf16, #tpu.memory_space<vmem>>, vector<16x128xbf16>
    %cst = arith.constant dense<0.000000e+00> : vector<16x128xf32>
    %9 = tpu.matmul %1, %8, %cst {dimension_numbers = #tpu.dot_dimension_numbers<[1], [0], [0], [1], [0, 0, 1, 1], [], []>} : vector<16x16xbf16>, vector<16x128xbf16>, vector<16x128xf32> -> vector<16x128xf32>
    %c0_13 = arith.constant 0 : index
    %c0_14 = arith.constant 0 : index
    %c0_15 = arith.constant 0 : index
    %10 = vector.load %arg3[%c0_13, %c0_14, %c0_15] : memref<1x1x128xf32, #tpu.memory_space<vmem>>, vector<1x1x128xf32>
    %11 = vector.shape_cast %10 : vector<1x1x128xf32> to vector<1x128xf32>
    %12 = vector.broadcast %11 : vector<1x128xf32> to vector<16x128xf32>
    %13 = arith.addf %9, %12 : vector<16x128xf32>
    %14 = arith.truncf %13 : vector<16x128xf32> to vector<16x128xbf16>
    %cst_16 = arith.constant dense<0.000000e+00> : vector<16x16xf32>
    %15 = tpu.matmul %14, %3, %cst_16 {dimension_numbers = #tpu.dot_dimension_numbers<[1], [0], [0], [1], [0, 0, 1, 1], [], []>} : vector<16x128xbf16>, vector<128x16xbf16>, vector<16x16xf32> -> vector<16x16xf32>
    %16 = vector.broadcast %7 : vector<1x16xf32> to vector<16x16xf32>
    %17 = arith.addf %15, %16 : vector<16x16xf32>
    %cst_17 = arith.constant dense<0xFF800000> : vector<16xf32>
    %18 = vector.multi_reduction <maximumf>, %17, %cst_17 [1] : vector<16x16xf32> to vector<16xf32>
    %19 = vector.shape_cast %18 : vector<16xf32> to vector<16x1xf32>
    %20 = vector.broadcast %19 : vector<16x1xf32> to vector<16x16xf32>
    %21 = arith.subf %17, %20 : vector<16x16xf32>
    %22 = math.exp %21 : vector<16x16xf32>
    %cst_18 = arith.constant dense<0.000000e+00> : vector<16xf32>
    %23 = vector.multi_reduction <add>, %22, %cst_18 [1] : vector<16x16xf32> to vector<16xf32>
    %24 = vector.shape_cast %23 : vector<16xf32> to vector<16x1xf32>
    %25 = vector.broadcast %24 : vector<16x1xf32> to vector<16x16xf32>
    %26 = arith.divf %22, %25 : vector<16x16xf32>
    %27 = arith.truncf %26 : vector<16x16xf32> to vector<16x16xbf16>
    %cst_19 = arith.constant dense<0.000000e+00> : vector<16x128xf32>
    %28 = tpu.matmul %27, %5, %cst_19 {dimension_numbers = #tpu.dot_dimension_numbers<[1], [0], [0], [1], [0, 0, 1, 1], [], []>} : vector<16x16xbf16>, vector<16x128xbf16>, vector<16x128xf32> -> vector<16x128xf32>
    %29 = arith.addf %13, %28 : vector<16x128xf32>
    %30 = arith.truncf %29 : vector<16x128xf32> to vector<16x128xbf16>
    %c0_20 = arith.constant 0 : index
    %c0_21 = arith.constant 0 : index
    %31 = vector.load %arg8[%c0_20, %c0_21] : memref<128x8xbf16, #tpu.memory_space<vmem>>, vector<128x8xbf16>
    %cst_22 = arith.constant dense<0.000000e+00> : vector<16x8xf32>
    %32 = tpu.matmul %30, %31, %cst_22 {dimension_numbers = #tpu.dot_dimension_numbers<[1], [0], [0], [1], [0, 0, 1, 1], [], []>} : vector<16x128xbf16>, vector<128x8xbf16>, vector<16x8xf32> -> vector<16x8xf32>
    %c0_23 = arith.constant 0 : index
    %c0_24 = arith.constant 0 : index
    %33 = vector.load %arg9[%c0_23, %c0_24] : memref<1x8xf32, #tpu.memory_space<vmem>>, vector<1x8xf32>
    %34 = vector.broadcast %33 : vector<1x8xf32> to vector<16x8xf32>
    %35 = arith.addf %32, %34 : vector<16x8xf32>
    %36 = tpu.transpose %35, [1, 0] : vector<16x8xf32> -> vector<8x16xf32>
    %c0_25 = arith.constant 0 : index
    %c0_26 = arith.constant 0 : index
    %c0_27 = arith.constant 0 : index
    %37 = vector.load %arg10[%c0_25, %c0_26, %c0_27] : memref<1x8x16xf32, #tpu.memory_space<vmem>>, vector<1x8x16xf32>
    %38 = vector.shape_cast %37 : vector<1x8x16xf32> to vector<8x16xf32>
    %39 = vector.shape_cast %36 : vector<8x16xf32> to vector<1x8x16xf32>
    tpu.vector_store %arg10[%c0_25, %c0_26, %c0_27], %39 {strides = array<i32>} : memref<1x8x16xf32, #tpu.memory_space<vmem>>, vector<1x8x16xf32>,
    return
  }
  func.func @transform_0(%arg0: i32, %arg1: i32) -> (i32, i32, i32) {
    %c0_i32 = arith.constant 0 : i32
    %c0_i32_0 = arith.constant 0 : i32
    return %arg0, %arg1, %c0_i32 : i32, i32, i32
  }
  func.func @transform_1(%arg0: i32, %arg1: i32) -> (i32, i32, i32) {
    %c0_i32 = arith.constant 0 : i32
    %c0_i32_0 = arith.constant 0 : i32
    %c0_i32_1 = arith.constant 0 : i32
    return %arg0, %c0_i32, %c0_i32_0 : i32, i32, i32
  }
  func.func @transform_2(%arg0: i32, %arg1: i32) -> (i32, i32, i32) {
    %c0_i32 = arith.constant 0 : i32
    %c0_i32_0 = arith.constant 0 : i32
    %c0_i32_1 = arith.constant 0 : i32
    return %arg0, %c0_i32, %c0_i32_0 : i32, i32, i32
  }
  func.func @transform_3(%arg0: i32, %arg1: i32) -> (i32, i32, i32) {
    %c0_i32 = arith.constant 0 : i32
    %c0_i32_0 = arith.constant 0 : i32
    %c0_i32_1 = arith.constant 0 : i32
    return %arg0, %c0_i32, %c0_i32_0 : i32, i32, i32
  }
  func.func @transform_4(%arg0: i32, %arg1: i32) -> (i32, i32, i32) {
    %c0_i32 = arith.constant 0 : i32
    %c0_i32_0 = arith.constant 0 : i32
    %c0_i32_1 = arith.constant 0 : i32
    return %arg0, %c0_i32, %c0_i32_0 : i32, i32, i32
  }
  func.func @transform_5(%arg0: i32, %arg1: i32) -> (i32, i32) {
    %c0_i32 = arith.constant 0 : i32
    %c0_i32_0 = arith.constant 0 : i32
    %c0_i32_1 = arith.constant 0 : i32
    return %c0_i32, %c0_i32_0 : i32, i32
  }
  func.func @transform_6(%arg0: i32, %arg1: i32) -> (i32, i32) {
    %c0_i32 = arith.constant 0 : i32
    %c0_i32_0 = arith.constant 0 : i32
    %c0_i32_1 = arith.constant 0 : i32
    return %c0_i32, %c0_i32_0 : i32, i32
  }
  func.func @transform_7(%arg0: i32, %arg1: i32) -> (i32, i32) {
    %c0_i32 = arith.constant 0 : i32
    %c0_i32_0 = arith.constant 0 : i32
    %c0_i32_1 = arith.constant 0 : i32
    return %c0_i32, %c0_i32_0 : i32, i32
  }
  func.func @transform_8(%arg0: i32, %arg1: i32) -> (i32, i32, i32) {
    %c0_i32 = arith.constant 0 : i32
    %c0_i32_0 = arith.constant 0 : i32
    return %arg0, %c0_i32, %arg1 : i32, i32, i32
  }
}

</mosaic_0001>

<llo_original>
// kernel: tpu_custom_call.1
$region0: #{tpu_custom_call.1}
  #allocation0 [shape = 'u32[]', space=smem, size = 0x4, offset = 0x4, fixed_abs, tag = 'smem constant byte address 0x4 - core index']
  #allocation1 [shape = 'u32[144,128]{1,0:T(1,128)}', space=vmem, size = 0x12000, scoped, tag = 'internal scratch']
  %s0 = inlined_call_operand.vmem [shape: bf16[2,16,16], index: 0, kind: input, shape index: {}]
  %s1 = inlined_call_operand.vmem [shape: f32[2,1,128], index: 1, kind: input, shape index: {}]
  %s2 = inlined_call_operand.vmem [shape: bf16[2,128,16], index: 2, kind: input, shape index: {}]
  %s3 = inlined_call_operand.vmem [shape: bf16[2,16,128], index: 3, kind: input, shape index: {}]
  %s4 = inlined_call_operand.vmem [shape: f32[2,1,16], index: 4, kind: input, shape index: {}]
  %s5 = inlined_call_operand.vmem [shape: bf16[16,128], index: 5, kind: input, shape index: {}]
  %s6 = inlined_call_operand.vmem [shape: bf16[128,8], index: 6, kind: input, shape index: {}]
  %s7 = inlined_call_operand.vmem [shape: f32[1,8], index: 7, kind: input, shape index: {}]
  %s8 = inlined_call_operand.hbm [shape: f32[2,8,16], index: 8, kind: output, shape index: {}]
  %s9 = sld [smem:[#allocation0]]
  $region65: #{tpu_custom_call.1} parent=0
    _
  %s11 = ssub.s32 1, %s9
  %s12 = scalar_select 0, %s11, %s9
  $region1: #{tpu_custom_call.1} parent=0
    #allocation2 [shape = 'u8[8192]{0}', space=vmem, size = 0x2000, scoped, tag = 'output window, operand 0']
    #allocation3 [shape = 's32[2]{0}', space=sflag, size = 0x8, scoped, tag = 'scoped memory for tpu_custom_call.1']
    %13 = vsyncpa [#allocation3], 0
    %s14 = scalar_lea.sflag [#allocation3], 1
    %15 = vsyncpa %s14, 0
    loop: start=0, step=1, limit=4
    $region2: #{tpu_custom_call.1} parent=1 // loop_pre_header
      _
    $region3: #{tpu_custom_call.1} parent=1 // loop_header
      %s17 = sphi 0, %s21
      %p18 = scmp.ge.s32.totalorder %s17, 4
      %s24 = sphi 0, %s36
      %s25 = sphi 0, %s32
      %s26 = sphi 0, %s24
      %s27 = sphi 0, %s25
      %s28 = sphi 0, %s26
      %s29 = sphi 0, %s27
      %s41 = sphi 0, %s43
      %s44 = sphi 0, %s41
      %s45 = sphi 0, %s44
      %s61 = sphi 0, %s45
      %s67 = sphi 0, %s69
      %s70 = sphi 0, %s67
      %s71 = sphi 0, %s70
      %s87 = sphi 0, %s71
      %s93 = sphi 0, %s95
      %s96 = sphi 0, %s93
      %s97 = sphi 0, %s96
      %s113 = sphi 0, %s97
      %s119 = sphi 0, %s121
      %s122 = sphi 0, %s119
      %s123 = sphi 0, %s122
      %s139 = sphi 0, %s123
      %s145 = sphi 0, %s147
      %s148 = sphi 0, %s145
      %s149 = sphi 0, %s148
      %s165 = sphi 0, %s149
      %s169 = sphi 0, %s169
      %s171 = sphi 0, %s169
      %s172 = sphi 0, %s171
      %s186 = sphi 0, %s172
      %s190 = sphi 0, %s190
      %s192 = sphi 0, %s190
      %s193 = sphi 0, %s192
      %s207 = sphi 0, %s193
      %s211 = sphi 0, %s211
      %s213 = sphi 0, %s211
      %s214 = sphi 0, %s213
      %s228 = sphi 0, %s214
      %s236 = sphi 0, %s238
      %s239 = sphi 0, %s236
      %s240 = sphi 0, %s239
      %s256 = sphi 0, %s240
    $region4: #{tpu_custom_call.1} parent=1 // loop_header_branch
      %20 = sbr.rel (%p18) target = $region8
    $region5: #{tpu_custom_call.1} parent=1 // loop_body
      %s22 = ssub.s32 %s17, 1
      %s23 = ssub.s32 %s17, 2
      %s30 = sadd.s32 1, %s25
      %p31 = scmp.ge.s32.totalorder %s30, 1
      %s32 = scalar_select %p31, 0, %s30
      %s33 = sadd.s32 1, %s24
      %s34 = scalar_select %p31, %s33, %s24
      %p35 = scmp.ge.s32.totalorder %s34, 2
      %s36 = scalar_select %p35, 0, %s34
      %s37 = ssub.s32 %s24, %s36
      %s38 = ssub.s32 %s25, %s32
      %s39 = sor.u32 %s37, %s38
      %p40 = scmp.eq.s32.totalorder %s39, 0
      %s42 = sadd.s32 %s41, 1
      %s43 = scalar_select %p40, %s41, %s42
      %p46 = pneg %p40
      %p47 = scmp.eq.s32.totalorder %s17, 1
      %p48 = por %p46, %p47
      %p49 = scmp.ne.s32.totalorder %s41, %s44
      %p50 = scmp.eq.s32.totalorder %s17, 0
      %p51 = por %p49, %p50
      %p52 = scmp.ne.s32.totalorder %s41, %s44
      %p53 = scmp.eq.s32.totalorder %s22, 1
      %p54 = por %p52, %p53
      %p55 = scmp.ne.s32.totalorder %s44, %s45
      %p56 = scmp.eq.s32.totalorder %s22, 0
      %p57 = por %p55, %p56
      %p58 = scmp.ne.s32.totalorder %s44, %s45
      %p59 = scmp.eq.s32.totalorder %s23, 1
      %p60 = por %p58, %p59
      %p62 = scmp.ne.s32.totalorder %s45, %s61
      %p63 = scmp.eq.s32.totalorder %s23, 0
      %p64 = por %p62, %p63
      %s65 = ssub.s32 %s24, %s36
      %p66 = scmp.eq.s32.totalorder %s65, 0
      %s68 = sadd.s32 %s67, 1
      %s69 = scalar_select %p66, %s67, %s68
      %p72 = pneg %p66
      %p73 = scmp.eq.s32.totalorder %s17, 1
      %p74 = por %p72, %p73
      %p75 = scmp.ne.s32.totalorder %s67, %s70
      %p76 = scmp.eq.s32.totalorder %s17, 0
      %p77 = por %p75, %p76
      %p78 = scmp.ne.s32.totalorder %s67, %s70
      %p79 = scmp.eq.s32.totalorder %s22, 1
      %p80 = por %p78, %p79
      %p81 = scmp.ne.s32.totalorder %s70, %s71
      %p82 = scmp.eq.s32.totalorder %s22, 0
      %p83 = por %p81, %p82
      %p84 = scmp.ne.s32.totalorder %s70, %s71
      %p85 = scmp.eq.s32.totalorder %s23, 1
      %p86 = por %p84, %p85
      %p88 = scmp.ne.s32.totalorder %s71, %s87
      %p89 = scmp.eq.s32.totalorder %s23, 0
      %p90 = por %p88, %p89
      %s91 = ssub.s32 %s24, %s36
      %p92 = scmp.eq.s32.totalorder %s91, 0
      %s94 = sadd.s32 %s93, 1
      %s95 = scalar_select %p92, %s93, %s94
      %p98 = pneg %p92
      %p99 = scmp.eq.s32.totalorder %s17, 1
      %p100 = por %p98, %p99
      %p101 = scmp.ne.s32.totalorder %s93, %s96
      %p102 = scmp.eq.s32.totalorder %s17, 0
      %p103 = por %p101, %p102
      %p104 = scmp.ne.s32.totalorder %s93, %s96
      %p105 = scmp.eq.s32.totalorder %s22, 1
      %p106 = por %p104, %p105
      %p107 = scmp.ne.s32.totalorder %s96, %s97
      %p108 = scmp.eq.s32.totalorder %s22, 0
      %p109 = por %p107, %p108
      %p110 = scmp.ne.s32.totalorder %s96, %s97
      %p111 = scmp.eq.s32.totalorder %s23, 1
      %p112 = por %p110, %p111
      %p114 = scmp.ne.s32.totalorder %s97, %s113
      %p115 = scmp.eq.s32.totalorder %s23, 0
      %p116 = por %p114, %p115
      %s117 = ssub.s32 %s24, %s36
      %p118 = scmp.eq.s32.totalorder %s117, 0
      %s120 = sadd.s32 %s119, 1
      %s121 = scalar_select %p118, %s119, %s120
      %p124 = pneg %p118
      %p125 = scmp.eq.s32.totalorder %s17, 1
      %p126 = por %p124, %p125
      %p127 = scmp.ne.s32.totalorder %s119, %s122
      %p128 = scmp.eq.s32.totalorder %s17, 0
      %p129 = por %p127, %p128
      %p130 = scmp.ne.s32.totalorder %s119, %s122
      %p131 = scmp.eq.s32.totalorder %s22, 1
      %p132 = por %p130, %p131
      %p133 = scmp.ne.s32.totalorder %s122, %s123
      %p134 = scmp.eq.s32.totalorder %s22, 0
      %p135 = por %p133, %p134
      %p136 = scmp.ne.s32.totalorder %s122, %s123
      %p137 = scmp.eq.s32.totalorder %s23, 1
      %p138 = por %p136, %p137
      %p140 = scmp.ne.s32.totalorder %s123, %s139
      %p141 = scmp.eq.s32.totalorder %s23, 0
      %p142 = por %p140, %p141
      %s143 = ssub.s32 %s24, %s36
      %p144 = scmp.eq.s32.totalorder %s143, 0
      %s146 = sadd.s32 %s145, 1
      %s147 = scalar_select %p144, %s145, %s146
      %p150 = pneg %p144
      %p151 = scmp.eq.s32.totalorder %s17, 1
      %p152 = por %p150, %p151
      %p153 = scmp.ne.s32.totalorder %s145, %s148
      %p154 = scmp.eq.s32.totalorder %s17, 0
      %p155 = por %p153, %p154
      %p156 = scmp.ne.s32.totalorder %s145, %s148
      %p157 = scmp.eq.s32.totalorder %s22, 1
      %p158 = por %p156, %p157
      %p159 = scmp.ne.s32.totalorder %s148, %s149
      %p160 = scmp.eq.s32.totalorder %s22, 0
      %p161 = por %p159, %p160
      %p162 = scmp.ne.s32.totalorder %s148, %s149
      %p163 = scmp.eq.s32.totalorder %s23, 1
      %p164 = por %p162, %p163
      %p166 = scmp.ne.s32.totalorder %s149, %s165
      %p167 = scmp.eq.s32.totalorder %s23, 0
      %p168 = por %p166, %p167
      %s170 = sadd.s32 %s169, 1
      %p173 = scmp.eq.s32.totalorder %s17, 1
      %p174 = scmp.ne.s32.totalorder %s169, %s171
      %p175 = scmp.eq.s32.totalorder %s17, 0
      %p176 = por %p174, %p175
      %p177 = scmp.ne.s32.totalorder %s169, %s171
      %p178 = scmp.eq.s32.totalorder %s22, 1
      %p179 = por %p177, %p178
      %p180 = scmp.ne.s32.totalorder %s171, %s172
      %p181 = scmp.eq.s32.totalorder %s22, 0
      %p182 = por %p180, %p181
      %p183 = scmp.ne.s32.totalorder %s171, %s172
      %p184 = scmp.eq.s32.totalorder %s23, 1
      %p185 = por %p183, %p184
      %p187 = scmp.ne.s32.totalorder %s172, %s186
      %p188 = scmp.eq.s32.totalorder %s23, 0
      %p189 = por %p187, %p188
      %s191 = sadd.s32 %s190, 1
      %p194 = scmp.eq.s32.totalorder %s17, 1
      %p195 = scmp.ne.s32.totalorder %s190, %s192
      %p196 = scmp.eq.s32.totalorder %s17, 0
      %p197 = por %p195, %p196
      %p198 = scmp.ne.s32.totalorder %s190, %s192
      %p199 = scmp.eq.s32.totalorder %s22, 1
      %p200 = por %p198, %p199
      %p201 = scmp.ne.s32.totalorder %s192, %s193
      %p202 = scmp.eq.s32.totalorder %s22, 0
      %p203 = por %p201, %p202
      %p204 = scmp.ne.s32.totalorder %s192, %s193
      %p205 = scmp.eq.s32.totalorder %s23, 1
      %p206 = por %p204, %p205
      %p208 = scmp.ne.s32.totalorder %s193, %s207
      %p209 = scmp.eq.s32.totalorder %s23, 0
      %p210 = por %p208, %p209
      %s212 = sadd.s32 %s211, 1
      %p215 = scmp.eq.s32.totalorder %s17, 1
      %p216 = scmp.ne.s32.totalorder %s211, %s213
      %p217 = scmp.eq.s32.totalorder %s17, 0
      %p218 = por %p216, %p217
      %p219 = scmp.ne.s32.totalorder %s211, %s213
      %p220 = scmp.eq.s32.totalorder %s22, 1
      %p221 = por %p219, %p220
      %p222 = scmp.ne.s32.totalorder %s213, %s214
      %p223 = scmp.eq.s32.totalorder %s22, 0
      %p224 = por %p222, %p223
      %p225 = scmp.ne.s32.totalorder %s213, %s214
      %p226 = scmp.eq.s32.totalorder %s23, 1
      %p227 = por %p225, %p226
      %p229 = scmp.ne.s32.totalorder %s214, %s228
      %p230 = scmp.eq.s32.totalorder %s23, 0
      %p231 = por %p229, %p230
      %s232 = ssub.s32 %s24, %s36
      %s233 = ssub.s32 %s25, %s32
      %s234 = sor.u32 %s232, %s233
      %p235 = scmp.eq.s32.totalorder %s234, 0
      %s237 = sadd.s32 %s236, 1
      %s238 = scalar_select %p235, %s236, %s237
      %p241 = pneg %p235
      %p242 = scmp.eq.s32.totalorder %s17, 1
      %p243 = por %p241, %p242
      %p244 = scmp.ne.s32.totalorder %s236, %s239
      %p245 = scmp.eq.s32.totalorder %s17, 0
      %p246 = por %p244, %p245
      %p247 = scmp.ne.s32.totalorder %s236, %s239
      %p248 = scmp.eq.s32.totalorder %s22, 1
      %p249 = por %p247, %p248
      %p250 = scmp.ne.s32.totalorder %s239, %s240
      %p251 = scmp.eq.s32.totalorder %s22, 0
      %p252 = por %p250, %p251
      %p253 = scmp.ne.s32.totalorder %s239, %s240
      %p254 = scmp.eq.s32.totalorder %s23, 1
      %p255 = por %p253, %p254
      %p257 = scmp.ne.s32.totalorder %s240, %s256
      %p258 = scmp.eq.s32.totalorder %s23, 0
      %p259 = por %p257, %p258
      %p260 = scmp.le.s32.totalorder 1, %s17
      %p261 = scmp.lt.s32.totalorder %s17, 3
      %p262 = pnand %p260, %p261
      %p263 = pneg %p262
      // Predicated region
      $region9: #{tpu_custom_call.1} parent=5 // pred_check
        _
      $region10: #{tpu_custom_call.1} parent=5 // pred_check_branch
        %265 = sbr.rel (%p262) target = $region12
      $region11: #{tpu_custom_call.1} parent=5 // pred_region
        %s266 = ssub.s32 %s17, 1
        // Predicated region
        $region13: #{tpu_custom_call.1} parent=11 // pred_check
          %p267 = pneg %p182
        $region14: #{tpu_custom_call.1} parent=11 // pred_check_branch
          %269 = sbr.rel (%p267) target = $region16
        $region15: #{tpu_custom_call.1} parent=11 // pred_region
          _
        $region16: #{tpu_custom_call.1} parent=11 // pred_fallthru
          _
        // Predicated region
        $region17: #{tpu_custom_call.1} parent=11 // pred_check
          %p270 = pneg %p203
        $region18: #{tpu_custom_call.1} parent=11 // pred_check_branch
          %272 = sbr.rel (%p270) target = $region20
        $region19: #{tpu_custom_call.1} parent=11 // pred_region
          _
        $region20: #{tpu_custom_call.1} parent=11 // pred_fallthru
          _
        // Predicated region
        $region21: #{tpu_custom_call.1} parent=11 // pred_check
          %p273 = pneg %p224
        $region22: #{tpu_custom_call.1} parent=11 // pred_check_branch
          %275 = sbr.rel (%p273) target = $region24
        $region23: #{tpu_custom_call.1} parent=11 // pred_region
          _
        $region24: #{tpu_custom_call.1} parent=11 // pred_fallthru
          _
      $region12: #{tpu_custom_call.1} parent=5 // pred_fallthru
        _
      %p276 = scmp.lt.s32.totalorder %s17, 2
      // Predicated region
      $region25: #{tpu_custom_call.1} parent=5 // pred_check
        %p277 = pneg %p276
      $region26: #{tpu_custom_call.1} parent=5 // pred_check_branch
        %279 = sbr.rel (%p277) target = $region28
      $region27: #{tpu_custom_call.1} parent=5 // pred_region
        // Predicated region
        $region29: #{tpu_custom_call.1} parent=27 // pred_check
          %p280 = pneg %p51
        $region30: #{tpu_custom_call.1} parent=27 // pred_check_branch
          %282 = sbr.rel (%p280) target = $region32
        $region31: #{tpu_custom_call.1} parent=27 // pred_region
          %s283 = smul.u32 2, %s25
          %p284 = scmp.lt.s32.totalorder %s24, 1
          %s285 = scalar_select %p284, %s24, 1
          %p286 = scmp.lt.s32.totalorder %s283, 1
          %s287 = scalar_select %p286, %s283, 1
          %s288 = smul.addr %s285, 2
          %s289 = sadd.s32 %s287, %s288
          %s290 = smul.addr %s289, 4
          %s291 = scalar_lea.vmem %s0, %s290
          %s292 = smul.u32 2, %s25
        $region32: #{tpu_custom_call.1} parent=27 // pred_fallthru
          _
        // Predicated region
        $region33: #{tpu_custom_call.1} parent=27 // pred_check
          %p293 = pneg %p77
        $region34: #{tpu_custom_call.1} parent=27 // pred_check_branch
          %295 = sbr.rel (%p293) target = $region36
        $region35: #{tpu_custom_call.1} parent=27 // pred_region
          %p296 = scmp.lt.s32.totalorder %s24, 1
          %s297 = scalar_select %p296, %s24, 1
          %s298 = scalar_lea.vmem %s1, %s297
        $region36: #{tpu_custom_call.1} parent=27 // pred_fallthru
          _
        // Predicated region
        $region37: #{tpu_custom_call.1} parent=27 // pred_check
          %p299 = pneg %p103
        $region38: #{tpu_custom_call.1} parent=27 // pred_check_branch
          %301 = sbr.rel (%p299) target = $region40
        $region39: #{tpu_custom_call.1} parent=27 // pred_region
          %p302 = scmp.lt.s32.totalorder %s24, 1
          %s303 = scalar_select %p302, %s24, 1
          %s304 = smul.addr %s303, 16
          %s305 = smul.addr %s304, 4
          %s306 = scalar_lea.vmem %s2, %s305
        $region40: #{tpu_custom_call.1} parent=27 // pred_fallthru
          _
        // Predicated region
        $region41: #{tpu_custom_call.1} parent=27 // pred_check
          %p307 = pneg %p129
        $region42: #{tpu_custom_call.1} parent=27 // pred_check_branch
          %309 = sbr.rel (%p307) target = $region44
        $region43: #{tpu_custom_call.1} parent=27 // pred_region
          %p310 = scmp.lt.s32.totalorder %s24, 1
          %s311 = scalar_select %p310, %s24, 1
          %s312 = smul.addr %s311, 2
          %s313 = smul.addr %s312, 4
          %s314 = scalar_lea.vmem %s3, %s313
        $region44: #{tpu_custom_call.1} parent=27 // pred_fallthru
          _
        // Predicated region
        $region45: #{tpu_custom_call.1} parent=27 // pred_check
          %p315 = pneg %p155
        $region46: #{tpu_custom_call.1} parent=27 // pred_check_branch
          %317 = sbr.rel (%p315) target = $region48
        $region47: #{tpu_custom_call.1} parent=27 // pred_region
          %p318 = scmp.lt.s32.totalorder %s24, 1
          %s319 = scalar_select %p318, %s24, 1
          %s320 = scalar_lea.vmem %s4, %s319
        $region48: #{tpu_custom_call.1} parent=27 // pred_fallthru
          _
      $region28: #{tpu_custom_call.1} parent=5 // pred_fallthru
        _
      %p321 = scmp.le.s32.totalorder 1, %s17
      %p322 = scmp.lt.s32.totalorder %s17, 3
      %p323 = pnand %p321, %p322
      %p324 = pneg %p323
      // Predicated region
      $region49: #{tpu_custom_call.1} parent=5 // pred_check
        _
      $region50: #{tpu_custom_call.1} parent=5 // pred_check_branch
        %326 = sbr.rel (%p323) target = $region52
      $region51: #{tpu_custom_call.1} parent=5 // pred_region
        %s327 = ssub.s32 %s17, 1
        %s328 = smul.u32 2, %s27
        %p329 = scmp.lt.s32.totalorder %s26, 1
        %s330 = scalar_select %p329, %s26, 1
        %p331 = scmp.lt.s32.totalorder %s328, 1
        %s332 = scalar_select %p331, %s328, 1
        %s333 = smul.addr %s330, 2
        %s334 = sadd.s32 %s332, %s333
        %s335 = smul.addr %s334, 4
        %s336 = scalar_lea.vmem %s0, %s335
        %p337 = pneg %p57
        %p338 = pneg %p54
        %p339 = scmp.lt.s32.totalorder %s26, 1
        %s340 = scalar_select %p339, %s26, 1
        %s341 = scalar_lea.vmem %s1, %s340
        %p342 = pneg %p83
        %p343 = pneg %p80
        %p344 = scmp.lt.s32.totalorder %s26, 1
        %s345 = scalar_select %p344, %s26, 1
        %s346 = smul.addr %s345, 16
        %s347 = smul.addr %s346, 4
        %s348 = scalar_lea.vmem %s2, %s347
        %p349 = pneg %p109
        %p350 = pneg %p106
        %p351 = scmp.lt.s32.totalorder %s26, 1
        %s352 = scalar_select %p351, %s26, 1
        %s353 = smul.addr %s352, 2
        %s354 = smul.addr %s353, 4
        %s355 = scalar_lea.vmem %s3, %s354
        %p356 = pneg %p135
        %p357 = pneg %p132
        %p358 = scmp.lt.s32.totalorder %s26, 1
        %s359 = scalar_select %p358, %s26, 1
        %s360 = scalar_lea.vmem %s4, %s359
        %p361 = pneg %p161
        %p362 = pneg %p158
        %p363 = pneg %p182
        %p364 = pneg %p179
        %p365 = pneg %p203
        %p366 = pneg %p200
        %p367 = pneg %p224
        %p368 = pneg %p221
        %p369 = pneg %p252
        %p370 = pneg %p249
        %s371 = sand.u32 %s239, 1
        %s372 = scalar_lea.sflag [#allocation3], %s371
        %s373 = sand.u32 %s239, 1
        %s374 = smul.addr %s373, 8
        %s375 = scalar_lea.vmem [#allocation2], %s374
        %s376 = smul.u32 2, %s27
        %p377 = scmp.lt.s32.totalorder %s26, 1
        %s378 = scalar_select %p377, %s26, 1
        %p379 = scmp.lt.s32.totalorder %s376, 1
        %s380 = scalar_select %p379, %s376, 1
        %s381 = smul.addr %s378, 2
        %s382 = sadd.s32 %s380, %s381
        %s383 = smul.addr %s382, 4
        %s384 = scalar_lea.vmem %s0, %s383
        %s385 = smul.u32 2, %s27
        %p386 = scmp.lt.s32.totalorder %s26, 1
        %s387 = scalar_select %p386, %s26, 1
        %s388 = scalar_lea.vmem %s1, %s387
        %p389 = scmp.lt.s32.totalorder %s26, 1
        %s390 = scalar_select %p389, %s26, 1
        %s391 = smul.addr %s390, 16
        %s392 = smul.addr %s391, 4
        %s393 = scalar_lea.vmem %s2, %s392
        %p394 = scmp.lt.s32.totalorder %s26, 1
        %s395 = scalar_select %p394, %s26, 1
        %s396 = smul.addr %s395, 2
        %s397 = smul.addr %s396, 4
        %s398 = scalar_lea.vmem %s3, %s397
        %p399 = scmp.lt.s32.totalorder %s26, 1
        %s400 = scalar_select %p399, %s26, 1
        %s401 = scalar_lea.vmem %s4, %s400
        %v403 = vld [vmem:[%s384] sm:$0xf]
        %v404 = vld [vmem:[%s384 + $0x4] sm:$0xf]
        %v405 = vld [vmem:[%s393] sm:$0xf]
        %v406 = vld [vmem:[%s393 + $0x4] sm:$0xf]
        %v407 = vld [vmem:[%s393 + $0x8] sm:$0xf]
        %v408 = vld [vmem:[%s393 + $0xc] sm:$0xf]
        %v409 = vld [vmem:[%s393 + $0x10] sm:$0xf]
        %v410 = vld [vmem:[%s393 + $0x14] sm:$0xf]
        %v411 = vld [vmem:[%s393 + $0x18] sm:$0xf]
        %v412 = vld [vmem:[%s393 + $0x1c] sm:$0xf]
        %v413 = vld [vmem:[%s393 + $0x20] sm:$0xf]
        %v414 = vld [vmem:[%s393 + $0x24] sm:$0xf]
        %v415 = vld [vmem:[%s393 + $0x28] sm:$0xf]
        %v416 = vld [vmem:[%s393 + $0x2c] sm:$0xf]
        %v417 = vld [vmem:[%s393 + $0x30] sm:$0xf]
        %v418 = vld [vmem:[%s393 + $0x34] sm:$0xf]
        %v419 = vld [vmem:[%s393 + $0x38] sm:$0xf]
        %v420 = vld [vmem:[%s393 + $0x3c] sm:$0xf]
        %v421 = vld [vmem:[%s398] sm:$0xf]
        %v422 = vld [vmem:[%s398 + $0x4] sm:$0xf]
        %v423 = vld [vmem:[%s401] sm:$0x1]
        %v424 = vld [vmem:[%s5] sm:$0xf]
        %v425 = vld [vmem:[%s5 + $0x4] sm:$0xf]
        %v426 = vld [vmem:[%s388] sm:$0x1]
        %v428 = vlaneseq
        %v429 = vshrl.u32 %v428, 7
        %v430 = vsub.s32 0, %v429
        %v431 = vrot.slane %v426, %v430
        %v435 = vunpack.c.l.b16 %v403
        %v436 = vunpack.c.l.b16 %v404
        %v437 = vpack.c.b16 %v436, %v435
        %v440 = vunpack.c.l.b16 %v424
        %v441 = vunpack.c.l.b16 %v425
        %v442 = vpack.c.b16 %v441, %v440
        %vm444 = vcmask 130048
        %v446 = vsel %vm444, %v437, 0
        %448 = vmatprep.subr.bf16.mxu0 0
        %449 = vmatpush1.bf16.msra.mxu0 %v442
        %450 = vmatprep.subr.bf16.mxu0 0
        %451 = vmatpush1.bf16.msra.mxu0 0
        %452 = vmatprep.subr.bf16.mxu0 0
        %453 = vmatpush1.bf16.msra.mxu0 0
        %454 = vmatprep.subr.bf16.mxu0 0
        %455 = vmatpush1.bf16.msra.mxu0 0
        %456 = vmatprep.subr.bf16.mxu0 0
        %457 = vmatpush1.bf16.msra.mxu0 0
        %458 = vmatprep.subr.bf16.mxu0 0
        %459 = vmatpush1.bf16.msra.mxu0 0
        %460 = vmatprep.subr.bf16.mxu0 0
        %461 = vmatpush1.bf16.msra.mxu0 0
        %462 = vmatprep.subr.bf16.mxu0 0
        %463 = vmatpush1.bf16.msra.mxu0 0
        %464 = vmatprep.subr.bf16.mxu0 0
        %465 = vmatpush1.bf16.msra.mxu0 0
        %466 = vmatprep.subr.bf16.mxu0 0
        %467 = vmatpush1.bf16.msra.mxu0 0
        %468 = vmatprep.subr.bf16.mxu0 0
        %469 = vmatpush1.bf16.msra.mxu0 0
        %470 = vmatprep.subr.bf16.mxu0 0
        %471 = vmatpush1.bf16.msra.mxu0 0
        %472 = vmatprep.subr.bf16.mxu0 0
        %473 = vmatpush1.bf16.msra.mxu0 0
        %474 = vmatprep.subr.bf16.mxu0 0
        %475 = vmatpush1.bf16.msra.mxu0 0
        %476 = vmatprep.subr.bf16.mxu0 0
        %477 = vmatpush1.bf16.msra.mxu0 0
        %478 = vmatprep.subr.bf16.mxu0 0
        %479 = vmatpush1.bf16.msra.mxu0 0
        %480 = vmatprep.mubr.bf16.mxu0 0
        %481 = vmatmul.mubr.bf16.gmra.mrb[0].mxu0 %v446
        %v482 = vpop.f32.mrb[0].mxu0
        %v483 = vadd.f32 %v431, %v482
        %v484 = vpop.f32.mrb[0].mxu0
        %v485 = vpop.f32.mrb[0].mxu0
        %v486 = vadd.f32 %v431, %v485
        %v487 = vpop.f32.mrb[0].mxu0
        %488 = vdwg.mxu0
        %v489 = vpack.c.bf16 %v486, %v483
        %v491 = vlaneseq
        %v492 = vshrl.u32 %v491, 7
        %v493 = vsub.s32 0, %v492
        %v494 = vrot.slane %v423, %v493
        %v512 = vunpack.c.l.b16 %v405
        %v513 = vunpack.c.l.b16 %v406
        %v514 = vunpack.c.l.b16 %v407
        %v515 = vunpack.c.l.b16 %v408
        %v516 = vunpack.c.l.b16 %v409
        %v517 = vunpack.c.l.b16 %v410
        %v518 = vunpack.c.l.b16 %v411
        %v519 = vunpack.c.l.b16 %v412
        %v520 = vunpack.c.l.b16 %v413
        %v521 = vunpack.c.l.b16 %v414
        %v522 = vunpack.c.l.b16 %v415
        %v523 = vunpack.c.l.b16 %v416
        %v524 = vunpack.c.l.b16 %v417
        %v525 = vunpack.c.l.b16 %v418
        %v526 = vunpack.c.l.b16 %v419
        %v527 = vunpack.c.l.b16 %v420
        %v528 = vpack.c.b16 %v513, %v512
        %v529 = vpack.c.b16 %v515, %v514
        %v530 = vpack.c.b16 %v517, %v516
        %v531 = vpack.c.b16 %v519, %v518
        %v532 = vpack.c.b16 %v521, %v520
        %v533 = vpack.c.b16 %v523, %v522
        %v534 = vpack.c.b16 %v525, %v524
        %v535 = vpack.c.b16 %v527, %v526
        %544 = vmatprep.subr.bf16.mxu0 0
        %545 = vmatpush1.bf16.msra.mxu0 %v528
        %546 = vmatprep.subr.bf16.mxu0 0
        %547 = vmatpush1.bf16.msra.mxu0 %v529
        %548 = vmatprep.subr.bf16.mxu0 0
        %549 = vmatpush1.bf16.msra.mxu0 %v530
        %550 = vmatprep.subr.bf16.mxu0 0
        %551 = vmatpush1.bf16.msra.mxu0 %v531
        %552 = vmatprep.subr.bf16.mxu0 0
        %553 = vmatpush1.bf16.msra.mxu0 %v532
        %554 = vmatprep.subr.bf16.mxu0 0
        %555 = vmatpush1.bf16.msra.mxu0 %v533
        %556 = vmatprep.subr.bf16.mxu0 0
        %557 = vmatpush1.bf16.msra.mxu0 %v534
        %558 = vmatprep.subr.bf16.mxu0 0
        %559 = vmatpush1.bf16.msra.mxu0 %v535
        %560 = vmatprep.subr.bf16.mxu0 0
        %561 = vmatpush1.bf16.msra.mxu0 0
        %562 = vmatprep.subr.bf16.mxu0 0
        %563 = vmatpush1.bf16.msra.mxu0 0
        %564 = vmatprep.subr.bf16.mxu0 0
        %565 = vmatpush1.bf16.msra.mxu0 0
        %566 = vmatprep.subr.bf16.mxu0 0
        %567 = vmatpush1.bf16.msra.mxu0 0
        %568 = vmatprep.subr.bf16.mxu0 0
        %569 = vmatpush1.bf16.msra.mxu0 0
        %570 = vmatprep.subr.bf16.mxu0 0
        %571 = vmatpush1.bf16.msra.mxu0 0
        %572 = vmatprep.subr.bf16.mxu0 0
        %573 = vmatpush1.bf16.msra.mxu0 0
        %574 = vmatprep.subr.bf16.mxu0 0
        %575 = vmatpush1.bf16.msra.mxu0 0
        %576 = vmatprep.mubr.bf16.mxu0 0
        %577 = vmatmul.mubr.bf16.gmra.mrb[0].mxu0 %v489
        %v578 = vpop.f32.mrb[0].mxu0
        %v579 = vadd.f32 %v494, %v578
        %v580 = vpop.f32.mrb[0].mxu0
        %v581 = vpop.f32.mrb[0].mxu0
        %v582 = vadd.f32 %v494, %v581
        %v583 = vpop.f32.mrb[0].mxu0
        %584 = vdwg.mxu0
        %v585 = vsel %vm444, %v579, -inf
        %586 = vmax.xlane.f32.xlu0 %v585
        %v587 = vpop.xlane.xlu0 %586
        %v588 = vsel %vm444, %v582, -inf
        %589 = vmax.xlane.f32.xlu0 %v588
        %v590 = vpop.xlane.xlu0 %589
        %v591 = vsub.f32 %v579, %v587
        %v592 = vsub.f32 %v582, %v590
        %v593 = vmul.f32 %v591, 1.442695
        %v594 = vpow.pop %v593
        %v595 = vmul.f32 %v592, 1.442695
        %v596 = vpow.pop %v595
        %v597 = vsel %vm444, %v594, 0.0
        %598 = vadd.xlane.f32.xlu0 %v597
        %v599 = vpop.xlane.xlu0 %598
        %v600 = vsel %vm444, %v596, 0.0
        %601 = vadd.xlane.f32.xlu0 %v600
        %v602 = vpop.xlane.xlu0 %601
        %v603 = vrcp.pop %v599
        %v604 = vmul.f32 %v594, %v603
        %v605 = vrcp.pop %v602
        %v606 = vmul.f32 %v596, %v605
        %v607 = vpack.c.bf16 %v606, %v604
        %v610 = vunpack.c.l.b16 %v421
        %v611 = vunpack.c.l.b16 %v422
        %v612 = vpack.c.b16 %v611, %v610
        %v615 = vsel %vm444, %v607, 0
        %617 = vmatprep.subr.bf16.mxu0 0
        %618 = vmatpush1.bf16.msra.mxu0 %v612
        %619 = vmatprep.subr.bf16.mxu0 0
        %620 = vmatpush1.bf16.msra.mxu0 0
        %621 = vmatprep.subr.bf16.mxu0 0
        %622 = vmatpush1.bf16.msra.mxu0 0
        %623 = vmatprep.subr.bf16.mxu0 0
        %624 = vmatpush1.bf16.msra.mxu0 0
        %625 = vmatprep.subr.bf16.mxu0 0
        %626 = vmatpush1.bf16.msra.mxu0 0
        %627 = vmatprep.subr.bf16.mxu0 0
        %628 = vmatpush1.bf16.msra.mxu0 0
        %629 = vmatprep.subr.bf16.mxu0 0
        %630 = vmatpush1.bf16.msra.mxu0 0
        %631 = vmatprep.subr.bf16.mxu0 0
        %632 = vmatpush1.bf16.msra.mxu0 0
        %633 = vmatprep.subr.bf16.mxu0 0
        %634 = vmatpush1.bf16.msra.mxu0 0
        %635 = vmatprep.subr.bf16.mxu0 0
        %636 = vmatpush1.bf16.msra.mxu0 0
        %637 = vmatprep.subr.bf16.mxu0 0
        %638 = vmatpush1.bf16.msra.mxu0 0
        %639 = vmatprep.subr.bf16.mxu0 0
        %640 = vmatpush1.bf16.msra.mxu0 0
        %641 = vmatprep.subr.bf16.mxu0 0
        %642 = vmatpush1.bf16.msra.mxu0 0
        %643 = vmatprep.subr.bf16.mxu0 0
        %644 = vmatpush1.bf16.msra.mxu0 0
        %645 = vmatprep.subr.bf16.mxu0 0
        %646 = vmatpush1.bf16.msra.mxu0 0
        %647 = vmatprep.subr.bf16.mxu0 0
        %648 = vmatpush1.bf16.msra.mxu0 0
        %649 = vmatprep.mubr.bf16.mxu0 0
        %650 = vmatmul.mubr.bf16.gmra.mrb[0].mxu0 %v615
        %v651 = vpop.f32.mrb[0].mxu0
        %v652 = vadd.f32 0.0, %v651
        %v653 = vpop.f32.mrb[0].mxu0
        %v654 = vpop.f32.mrb[0].mxu0
        %v655 = vadd.f32 0.0, %v654
        %v656 = vpop.f32.mrb[0].mxu0
        %657 = vdwg.mxu0
        %v658 = vadd.f32 %v483, %v652
        %v659 = vadd.f32 %v486, %v655
        %v660 = vpack.c.bf16 %v659, %v658
        %v661 = vld [vmem:[%s6] sm:$0xf]
        %v662 = vld [vmem:[%s6 + $0x4] sm:$0xf]
        %v663 = vld [vmem:[%s6 + $0x8] sm:$0xf]
        %v664 = vld [vmem:[%s6 + $0xc] sm:$0xf]
        %v665 = vld [vmem:[%s6 + $0x10] sm:$0xf]
        %v666 = vld [vmem:[%s6 + $0x14] sm:$0xf]
        %v667 = vld [vmem:[%s6 + $0x18] sm:$0xf]
        %v668 = vld [vmem:[%s6 + $0x1c] sm:$0xf]
        %v669 = vld [vmem:[%s6 + $0x20] sm:$0xf]
        %v670 = vld [vmem:[%s6 + $0x24] sm:$0xf]
        %v671 = vld [vmem:[%s6 + $0x28] sm:$0xf]
        %v672 = vld [vmem:[%s6 + $0x2c] sm:$0xf]
        %v673 = vld [vmem:[%s6 + $0x30] sm:$0xf]
        %v674 = vld [vmem:[%s6 + $0x34] sm:$0xf]
        %v675 = vld [vmem:[%s6 + $0x38] sm:$0xf]
        %v676 = vld [vmem:[%s6 + $0x3c] sm:$0xf]
        %v677 = vld [vmem:[%s7] sm:$0x1]
        %v679 = vlaneseq
        %v680 = vshrl.u32 %v679, 7
        %v681 = vsub.s32 0, %v680
        %v682 = vrot.slane %v677, %v681
        %v700 = vunpack.c.l.b16 %v661
        %v701 = vunpack.c.l.b16 %v662
        %v702 = vunpack.c.l.b16 %v663
        %v703 = vunpack.c.l.b16 %v664
        %v704 = vunpack.c.l.b16 %v665
        %v705 = vunpack.c.l.b16 %v666
        %v706 = vunpack.c.l.b16 %v667
        %v707 = vunpack.c.l.b16 %v668
        %v708 = vunpack.c.l.b16 %v669
        %v709 = vunpack.c.l.b16 %v670
        %v710 = vunpack.c.l.b16 %v671
        %v711 = vunpack.c.l.b16 %v672
        %v712 = vunpack.c.l.b16 %v673
        %v713 = vunpack.c.l.b16 %v674
        %v714 = vunpack.c.l.b16 %v675
        %v715 = vunpack.c.l.b16 %v676
        %v716 = vpack.c.b16 %v701, %v700
        %v717 = vpack.c.b16 %v703, %v702
        %v718 = vpack.c.b16 %v705, %v704
        %v719 = vpack.c.b16 %v707, %v706
        %v720 = vpack.c.b16 %v709, %v708
        %v721 = vpack.c.b16 %v711, %v710
        %v722 = vpack.c.b16 %v713, %v712
        %v723 = vpack.c.b16 %v715, %v714
        %732 = vmatprep.subr.bf16.mxu0 0
        %733 = vmatpush1.bf16.msra.mxu0 %v716
        %734 = vmatprep.subr.bf16.mxu0 0
        %735 = vmatpush1.bf16.msra.mxu0 %v717
        %736 = vmatprep.subr.bf16.mxu0 0
        %737 = vmatpush1.bf16.msra.mxu0 %v718
        %738 = vmatprep.subr.bf16.mxu0 0
        %739 = vmatpush1.bf16.msra.mxu0 %v719
        %740 = vmatprep.subr.bf16.mxu0 0
        %741 = vmatpush1.bf16.msra.mxu0 %v720
        %742 = vmatprep.subr.bf16.mxu0 0
        %743 = vmatpush1.bf16.msra.mxu0 %v721
        %744 = vmatprep.subr.bf16.mxu0 0
        %745 = vmatpush1.bf16.msra.mxu0 %v722
        %746 = vmatprep.subr.bf16.mxu0 0
        %747 = vmatpush1.bf16.msra.mxu0 %v723
        %748 = vmatprep.subr.bf16.mxu0 0
        %749 = vmatpush1.bf16.msra.mxu0 0
        %750 = vmatprep.subr.bf16.mxu0 0
        %751 = vmatpush1.bf16.msra.mxu0 0
        %752 = vmatprep.subr.bf16.mxu0 0
        %753 = vmatpush1.bf16.msra.mxu0 0
        %754 = vmatprep.subr.bf16.mxu0 0
        %755 = vmatpush1.bf16.msra.mxu0 0
        %756 = vmatprep.subr.bf16.mxu0 0
        %757 = vmatpush1.bf16.msra.mxu0 0
        %758 = vmatprep.subr.bf16.mxu0 0
        %759 = vmatpush1.bf16.msra.mxu0 0
        %760 = vmatprep.subr.bf16.mxu0 0
        %761 = vmatpush1.bf16.msra.mxu0 0
        %762 = vmatprep.subr.bf16.mxu0 0
        %763 = vmatpush1.bf16.msra.mxu0 0
        %764 = vmatprep.mubr.bf16.mxu0 0
        %765 = vmatmul.mubr.bf16.gmra.mrb[0].mxu0 %v660
        %v766 = vpop.f32.mrb[0].mxu0
        %v767 = vadd.f32 %v682, %v766
        %v768 = vpop.f32.mrb[0].mxu0
        %v769 = vpop.f32.mrb[0].mxu0
        %v770 = vadd.f32 %v682, %v769
        %v771 = vpop.f32.mrb[0].mxu0
        %772 = vdwg.mxu0
        %773 = vxpose.xlu0.b32.start [1/16] %v767, 128
        %774 = vxpose.xlu0.b32.cont [2/16] %v770, 128
        %775 = vxpose.xlu0.b32.cont [3/16] 0.0, 128
        %776 = vxpose.xlu0.b32.cont [4/16] 0.0, 128
        %777 = vxpose.xlu0.b32.cont [5/16] 0.0, 128
        %778 = vxpose.xlu0.b32.cont [6/16] 0.0, 128
        %779 = vxpose.xlu0.b32.cont [7/16] 0.0, 128
        %780 = vxpose.xlu0.b32.cont [8/16] 0.0, 128
        %781 = vxpose.xlu0.b32.cont [9/16] 0.0, 128
        %782 = vxpose.xlu0.b32.cont [10/16] 0.0, 128
        %783 = vxpose.xlu0.b32.cont [11/16] 0.0, 128
        %784 = vxpose.xlu0.b32.cont [12/16] 0.0, 128
        %785 = vxpose.xlu0.b32.cont [13/16] 0.0, 128
        %786 = vxpose.xlu0.b32.cont [14/16] 0.0, 128
        %787 = vxpose.xlu0.b32.cont [15/16] 0.0, 128
        %788 = vxpose.xlu0.b32.end [16/16] 0.0, 128
        %v789 = vpop.trf.xlu0
        %v790 = vpop.trf.xlu0
        %v791 = vpop.trf.xlu0
        %v792 = vpop.trf.xlu0
        %v793 = vpop.trf.xlu0
        %v794 = vpop.trf.xlu0
        %v795 = vpop.trf.xlu0
        %v796 = vpop.trf.xlu0
        %v797 = vpop.trf.xlu0
        %v798 = vpop.trf.xlu0
        %v799 = vpop.trf.xlu0
        %v800 = vpop.trf.xlu0
        %v801 = vpop.trf.xlu0
        %v802 = vpop.trf.xlu0
        %v803 = vpop.trf.xlu0
        %v804 = vpop.trf.xlu0
        %805 = vst.msk [vmem:[%s375] sm:$0xff] %vm444, %v789
        %s806 = sand.u32 %s239, 1
        %s807 = scalar_lea.sflag [#allocation3], %s806
        %s808 = sand.u32 %s239, 1
        %s809 = smul.addr %s808, 8
        %s810 = scalar_lea.vmem [#allocation2], %s809
        // Predicated region
        $region53: #{tpu_custom_call.1} parent=51 // pred_check
          %p811 = pneg %p249
        $region54: #{tpu_custom_call.1} parent=51 // pred_check_branch
          %813 = sbr.rel (%p811) target = $region56
        $region55: #{tpu_custom_call.1} parent=51 // pred_region
          %s815 = ssub.s32 128, 128
          %816 = vsyncadd %s807, %s815
          %s817 = sadd.s32 %s27, %s26
          %s818 = smul.addr %s817, 128
          %s819 = scalar_lea.hbm %s8, %s818
          %s821 = sshll.u32 %s810, 4
          %s822 = int_to_ptr.vmem [resolvable:$true] %s821
          %824 = dma.vmem_to_hbm [thread:$0]  %s822, 128, %s819, %s807
        $region56: #{tpu_custom_call.1} parent=51 // pred_fallthru
          _
      $region52: #{tpu_custom_call.1} parent=5 // pred_fallthru
        _
      %p825 = scmp.le.s32.totalorder 2, %s17
      // Predicated region
      $region57: #{tpu_custom_call.1} parent=5 // pred_check
        %p826 = pneg %p825
      $region58: #{tpu_custom_call.1} parent=5 // pred_check_branch
        %828 = sbr.rel (%p826) target = $region60
      $region59: #{tpu_custom_call.1} parent=5 // pred_region
        %s829 = ssub.s32 %s17, 2
        // Predicated region
        $region61: #{tpu_custom_call.1} parent=59 // pred_check
          %p830 = pneg %p255
        $region62: #{tpu_custom_call.1} parent=59 // pred_check_branch
          %832 = sbr.rel (%p830) target = $region64
        $region63: #{tpu_custom_call.1} parent=59 // pred_region
          %s833 = sand.u32 %s240, 1
          %s834 = scalar_lea.sflag [#allocation3], %s833
          %s835 = sand.u32 %s240, 1
          %s836 = smul.addr %s835, 8
          %s837 = scalar_lea.vmem [#allocation2], %s836
          %838 = dma.done %s834, 128
        $region64: #{tpu_custom_call.1} parent=59 // pred_fallthru
          _
      $region60: #{tpu_custom_call.1} parent=5 // pred_fallthru
        _
    $region6: #{tpu_custom_call.1} parent=1 // loop_footer
      %s21 = sadd.s32 1, %s17
    $region7: #{tpu_custom_call.1} parent=1 // loop_footer_branch
      %16 = sbr.rel target = $region3
    $region8: #{tpu_custom_call.1} parent=1 // loop_exit
      _
    %839 = vsyncpa [#allocation3], 1
    %s840 = scalar_lea.sflag [#allocation3], 1
    %841 = vsyncpa %s840, 1

</llo_original>
